<compile_context>
chip_gen: v7x
topology: tpu7x:2x2x1
jax: 0.10.0
libtpu: 0.0.40
codegen_flags: <defaults>
</compile_context>

<pallas_src>
import jax
import jax.numpy as jnp
from jax.experimental import pallas as pl
from jax.experimental.pallas import tpu as pltpu


def _cdiv(a, b):
    return -(-a // b)


def _round_up(v, m):
    return _cdiv(v, m) * m


def _vmem_capacity_bytes():
    try:
        info = pltpu.get_tpu_info()
        cap = int(getattr(info, "vmem_capacity_bytes", 0) or 0)
        if cap > 0:
            return cap
    except Exception:
        pass
    return 64 * 1024 * 1024  # conservative (v7x-sized) fallback


# ---------------------------------------------------------------------------
# Kernel 1: per-row (b, c) sum and sum-of-squares over the spatial/lane axis.
#           stats[:, 0] = sum(x), stats[:, 1] = sum(x*x)
# ---------------------------------------------------------------------------
def _make_reduce_kernel(hw, lane_tile, lane_ragged):
    def kernel(x_ref, stat_ref):
        li = pl.program_id(1)

        @pl.when(li == 0)
        def _():
            stat_ref[...] = jnp.zeros_like(stat_ref)

        x = x_ref[...].astype(jnp.float32)
        if lane_ragged:
            # Mask the out-of-bounds lane tail of the last block (cdiv grid,
            # no wrapper-side padding).  Select, not multiply, so garbage
            # NaN/Inf in the OOB region cannot leak in.
            lane_idx = li * lane_tile + jax.lax.broadcasted_iota(
                jnp.int32, x.shape, 1)
            x = jnp.where(lane_idx < hw, x, 0.0)

        s = jnp.sum(x, axis=1, keepdims=True)
        sq = jnp.sum(x * x, axis=1, keepdims=True)
        stat_ref[...] += jnp.concatenate([s, sq], axis=1)

    return kernel


# ---------------------------------------------------------------------------
# Kernel 2: streaming per-row affine  out = a * x + c  (a, c lane-splats).
#           sc_ref packs [a, c] as (row_tile, 2) in f32.
# ---------------------------------------------------------------------------
def _affine_kernel(sc_ref, x_ref, o_ref):
    a = sc_ref[:, 0:1]                      # (row_tile, 1) f32
    c = sc_ref[:, 1:2]                      # (row_tile, 1) f32
    o_ref[...] = (x_ref[...].astype(jnp.float32) * a + c).astype(o_ref.dtype)


# ---------------------------------------------------------------------------
# Wrapper: BatchNorm2dWrap.forward(x, y=None) -> bn(x)
# ---------------------------------------------------------------------------
def batchnorm2d(x, weight, bias, y=None, *, eps=1e-5, training=True,
                running_mean=None, running_var=None):
    del y  # BatchNorm2dWrap.forward ignores the conditioning input.
    B, C, H, W = x.shape
    HW = H * W
    rows = B * C

    dtype_size = jnp.dtype(x.dtype).itemsize
    sublane = {4: 8, 2: 16, 1: 32}.get(dtype_size, 8)   # packed-dtype sublane

    # --- generation-aware VMEM budget ---------------------------------------
    phys_vmem = _vmem_capacity_bytes()
    # ~60% of physical, capped: ~38 MiB on v7x (64 MiB), ~77 MiB on v5e/v6e.
    vmem_cap = int(min(phys_vmem * 3 // 5, 96 * 1024 * 1024))
    # Affine kernel holds in + out, each double-buffered (~4x block), plus the
    # tiny scale stream: keep one block <= vmem_cap / 6 (and <= 8 MiB).
    block_budget = min(8 * 1024 * 1024, vmem_cap // 6)

    # --- lane tile: fixed large chunk + cdiv grid (no divisor-search) --------
    LANE_CAP = 8192                                   # multiple of 128
    lane_tile = HW if HW <= LANE_CAP else LANE_CAP    # full-extent allowed
    n_lane = _cdiv(HW, lane_tile)
    lane_ragged = (HW % lane_tile) != 0

    # --- row tile: fill the block budget, sublane-aligned --------------------
    budget_rows = block_budget // max(1, lane_tile * dtype_size)
    budget_rows = max(sublane, (budget_rows // sublane) * sublane)
    row_tile = min(4096, budget_rows)
    if rows >= 2 * sublane:
        # keep >= 2 row blocks so both v7x TensorCores get work
        row_tile = min(row_tile, _round_up(_cdiv(rows, 2), sublane))
    if row_tile >= rows:
        row_tile = rows                               # single full-extent block
    n_row = _cdiv(rows, row_tile)

    x2 = x.reshape(rows, HW)                          # contiguous -> free

    # --- batch statistics -----------------------------------------------------
    if training:
        stats = pl.pallas_call(
            _make_reduce_kernel(HW, lane_tile, lane_ragged),
            out_shape=jax.ShapeDtypeStruct((rows, 2), jnp.float32),
            grid_spec=pl.GridSpec(
                grid=(n_row, n_lane),
                in_specs=[pl.BlockSpec((row_tile, lane_tile),
                                       lambda r, l: (r, l))],
                out_specs=pl.BlockSpec((row_tile, 2), lambda r, l: (r, 0))),
            compiler_params=pltpu.CompilerParams(
                dimension_semantics=("parallel", "arbitrary"),
                vmem_limit_bytes=vmem_cap),
        )(x2)

        count = float(B * HW)
        per_c = stats.reshape(B, C, 2).sum(axis=0) / count     # (C, 2)
        mean = per_c[:, 0]                                     # (C,)
        var = per_c[:, 1] - mean * mean                        # biased (torch)
    else:
        mean = running_mean.astype(jnp.float32)
        var = running_var.astype(jnp.float32)

    # --- fold weight/bias/mean/var into per-row scale & shift (f32) ----------
    inv = jax.lax.rsqrt(var + eps)                             # (C,)
    a_c = weight.astype(jnp.float32) * inv                     # (C,)
    c_c = bias.astype(jnp.float32) - a_c * mean                # (C,)
    sc = jnp.stack([jnp.tile(a_c, B), jnp.tile(c_c, B)], axis=1)  # (rows, 2)

    # --- streaming affine ------------------------------------------------------
    out2 = pl.pallas_call(
        _affine_kernel,
        out_shape=jax.ShapeDtypeStruct((rows, HW), x.dtype),
        grid_spec=pl.GridSpec(
            grid=(n_row, n_lane),
            in_specs=[pl.BlockSpec((row_tile, 2), lambda r, l: (r, 0)),
                      pl.BlockSpec((row_tile, lane_tile), lambda r, l: (r, l))],
            out_specs=pl.BlockSpec((row_tile, lane_tile), lambda r, l: (r, l))),
        compiler_params=pltpu.CompilerParams(
            dimension_semantics=("parallel", "parallel"),
            vmem_limit_bytes=vmem_cap),
    )(sc, x2)

    return out2.reshape(B, C, H, W)


# ---------------------------------------------------------------------------
# Pure-JAX reference (mirrors torch.nn.BatchNorm2d training-mode forward)
# ---------------------------------------------------------------------------
def batchnorm2d_ref(x, weight, bias, eps=1e-5):
    mean = x.mean(axis=(0, 2, 3), keepdims=True)
    var = x.var(axis=(0, 2, 3), keepdims=True)            # biased, like torch
    xhat = (x - mean) / jnp.sqrt(var + eps)
    return weight.reshape(1, -1, 1, 1) * xhat + bias.reshape(1, -1, 1, 1)


if __name__ == "__main__":
    B, C, H, W = 2, 4, 16, 16
    K = 10  # conditioning-vector size; ignored by the forward.

    key = jax.random.PRNGKey(0)
    kx, kw, kb, ky = jax.random.split(key, 4)

    x = jax.random.normal(kx, (B, C, H, W), dtype=jnp.float32)
    y = jax.random.normal(ky, (B, K), dtype=jnp.float32)
    weight = 1.0 + 0.1 * jax.random.normal(kw, (C,), dtype=jnp.float32)
    bias = 0.1 * jax.random.normal(kb, (C,), dtype=jnp.float32)

    out = batchnorm2d(x, weight, bias, y)
    out = jax.block_until_ready(out)

    ref = batchnorm2d_ref(x, weight, bias)
    assert out.shape == (B, C, H, W)
    assert jnp.allclose(out, ref, atol=1e-4, rtol=1e-4), "mismatch vs reference"

    print("KERNEL_OK")
</pallas_src>

<mosaic_0001>
module attributes {stable_mosaic.version = 11 : i64} {
  func.func @kernel(%arg0: i32, %arg1: i32, %arg2: memref<8x256xf32, #tpu.memory_space<vmem>>, %arg3: memref<8x2xf32, #tpu.memory_space<vmem>>) attributes {dimension_semantics = [#tpu.dimension_semantics<parallel>, #tpu.dimension_semantics<arbitrary>], iteration_bounds = array<i64: 1, 1>, scalar_prefetch = 0 : i64, scratch_operands = 0 : i64, tpu.core_type = #tpu.core_type<tc>, window_params = [{transform_indices = @transform_0, window_bounds = array<i64: 8, 256>}, {transform_indices = @transform_1, window_bounds = array<i64: 8, 2>}]} {
    %c0_i32 = arith.constant 0 : i32
    %0 = arith.cmpi eq, %arg1, %c0_i32 : i32
    %1 = arith.extui %0 : i1 to i32
    %c0_i32_0 = arith.constant 0 : i32
    %2 = arith.cmpi ne, %1, %c0_i32_0 : i32
    scf.if %2 {
      %cst_7 = arith.constant 0.000000e+00 : f32
      %13 = vector.broadcast %cst_7 : f32 to vector<8x2xf32>
      %c0_8 = arith.constant 0 : index
      %c0_9 = arith.constant 0 : index
      %14 = vector.load %arg3[%c0_8, %c0_9] : memref<8x2xf32, #tpu.memory_space<vmem>>, vector<8x2xf32>
      tpu.vector_store %arg3[%c0_8, %c0_9], %13 {strides = array<i32>} : memref<8x2xf32, #tpu.memory_space<vmem>>, vector<8x2xf32>,
    } else {
    }
    %c0 = arith.constant 0 : index
    %c0_1 = arith.constant 0 : index
    %3 = vector.load %arg2[%c0, %c0_1] : memref<8x256xf32, #tpu.memory_space<vmem>>, vector<8x256xf32>
    %cst = arith.constant dense<0.000000e+00> : vector<8xf32>
    %4 = vector.multi_reduction <add>, %3, %cst [1] : vector<8x256xf32> to vector<8xf32>
    %5 = vector.shape_cast %4 : vector<8xf32> to vector<8x1xf32>
    %6 = arith.mulf %3, %3 : vector<8x256xf32>
    %cst_2 = arith.constant dense<0.000000e+00> : vector<8xf32>
    %7 = vector.multi_reduction <add>, %6, %cst_2 [1] : vector<8x256xf32> to vector<8xf32>
    %8 = vector.shape_cast %7 : vector<8xf32> to vector<8x1xf32>
    %c0_3 = arith.constant 0 : index
    %c0_4 = arith.constant 0 : index
    %9 = vector.load %arg3[%c0_3, %c0_4] : memref<8x2xf32, #tpu.memory_space<vmem>>, vector<8x2xf32>
    %10 = tpu.concatenate %5, %8 in 1 : vector<8x1xf32>, vector<8x1xf32> -> vector<8x2xf32>
    %11 = arith.addf %9, %10 : vector<8x2xf32>
    %c0_5 = arith.constant 0 : index
    %c0_6 = arith.constant 0 : index
    %12 = vector.load %arg3[%c0_5, %c0_6] : memref<8x2xf32, #tpu.memory_space<vmem>>, vector<8x2xf32>
    tpu.vector_store %arg3[%c0_5, %c0_6], %11 {strides = array<i32>} : memref<8x2xf32, #tpu.memory_space<vmem>>, vector<8x2xf32>,
    return
  }
  func.func @transform_0(%arg0: i32, %arg1: i32) -> (i32, i32) {
    %c0_i32 = arith.constant 0 : i32
    return %arg0, %arg1 : i32, i32
  }
  func.func @transform_1(%arg0: i32, %arg1: i32) -> (i32, i32) {
    %c0_i32 = arith.constant 0 : i32
    %c0_i32_0 = arith.constant 0 : i32
    return %arg0, %c0_i32 : i32, i32
  }
}

</mosaic_0001>

<llo_original>
// kernel: tpu_custom_call.1
$region0: #{tpu_custom_call.1}
  #allocation0 [shape = 'u32[]', space=smem, size = 0x4, offset = 0x4, fixed_abs, tag = 'smem constant byte address 0x4 - core index']
  #allocation1 [shape = 'u32[144,128]{1,0:T(1,128)}', space=vmem, size = 0x12000, scoped, tag = 'internal scratch']
  %s0 = inlined_call_operand.hbm [shape: f32[8,256], index: 0, kind: input, shape index: {}]
  %s1 = inlined_call_operand.vmem [shape: f32[8,2], index: 1, kind: output, shape index: {}]
  %s2 = sld [smem:[#allocation0]]
  $region22: #{tpu_custom_call.1} parent=0
    _
  %s4 = ssub.s32 1, %s2
  %s5 = scalar_select 0, %s4, %s2
  $region1: #{tpu_custom_call.1} parent=0
    #allocation2 [shape = 'u8[8192]{0}', space=vmem, size = 0x2000, scoped, tag = 'input window, operand 0, single buffered']
    #allocation3 [shape = 's32[1]{0}', space=sflag, size = 0x4, scoped, tag = 'scoped memory for tpu_custom_call.1']
    %6 = vsyncpa [#allocation3], 0
    // Predicated region
    $region2: #{tpu_custom_call.1} parent=1 // pred_check
      _
    $region3: #{tpu_custom_call.1} parent=1 // pred_check_branch
      %8 = sbr.rel (0) target = $region5
    $region4: #{tpu_custom_call.1} parent=1 // pred_region
      %s10 = ssub.s32 256, 256
      %11 = vsyncadd [#allocation3], %s10
      %s13 = sshll.u32 [#allocation2], 4
      %s14 = int_to_ptr.vmem [resolvable:$true] %s13
      %16 = dma.hbm_to_vmem [thread:$0]  %s0, 256, %s14, [#allocation3]
    $region5: #{tpu_custom_call.1} parent=1 // pred_fallthru
      _
    // Predicated region
    $region6: #{tpu_custom_call.1} parent=1 // pred_check
      _
    $region7: #{tpu_custom_call.1} parent=1 // pred_check_branch
      %18 = sbr.rel (0) target = $region9
    $region8: #{tpu_custom_call.1} parent=1 // pred_region
      %19 = dma.done [#allocation3], 256
    $region9: #{tpu_custom_call.1} parent=1 // pred_fallthru
      _
    %p20 = scmp.eq.s32.totalorder 0, 0
    // Predicated region
    $region10: #{tpu_custom_call.1} parent=1 // pred_check
      %p21 = pneg %p20
    $region11: #{tpu_custom_call.1} parent=1 // pred_check_branch
      %23 = sbr.rel (%p21) target = $region13
    $region12: #{tpu_custom_call.1} parent=1 // pred_region
      %vm24 = vcmask 15360
      %25 = vst.msk [vmem:[%s1] sm:$0xff] %vm24, 0.0
    $region13: #{tpu_custom_call.1} parent=1 // pred_fallthru
      _
    %v26 = vld [vmem:[#allocation2] sm:$0xff]
    %v27 = vld [vmem:[#allocation2 + $0x8] sm:$0xff]
    %v28 = vadd.f32 %v26, %v27
    %29 = vadd.xlane.f32.xlu0 %v28
    %v30 = vpop.xlane.xlu0 %29
    %v31 = vmul.f32 %v26, %v26
    %v32 = vmul.f32 %v27, %v27
    %v33 = vadd.f32 %v31, %v32
    %34 = vadd.xlane.f32.xlu0 %v33
    %v35 = vpop.xlane.xlu0 %34
    %v36 = vld [vmem:[%s1] sm:$0xff]
    %vm37 = vcmask 7168
    %v38 = vsel %vm37, %v30, %v35
    %v39 = vadd.f32 %v36, %v38
    %vm40 = vcmask 15360
    %41 = vst.msk [vmem:[%s1] sm:$0xff] %vm40, %v39
    // Predicated region
    $region14: #{tpu_custom_call.1} parent=1 // pred_check
      _
    $region15: #{tpu_custom_call.1} parent=1 // pred_check_branch
      %43 = sbr.rel (0) target = $region17
    $region16: #{tpu_custom_call.1} parent=1 // pred_region
      _
    $region17: #{tpu_custom_call.1} parent=1 // pred_fallthru
      _
    // Predicated region
    $region18: #{tpu_custom_call.1} parent=1 // pred_check
      _
    $region19: #{tpu_custom_call.1} parent=1 // pred_check_branch
      %45 = sbr.rel (0) target = $region21
    $region20: #{tpu_custom_call.1} parent=1 // pred_region
      _
    $region21: #{tpu_custom_call.1} parent=1 // pred_fallthru
      _
    %46 = vsyncpa [#allocation3], 1

</llo_original>
